<compile_context>
chip_gen: v6e
topology: v6e:2x2x1
jax: 0.10.0
libtpu: 0.0.40
codegen_flags: <defaults>
</compile_context>

<pallas_src>
import functools

import jax
import jax.numpy as jnp
from jax import lax
from jax.experimental import pallas as pl
from jax.experimental.pallas import tpu as pltpu


def _round_up(x, m):
    return (x + m - 1) // m * m


def _same_type_agg_kernel(tgt_ref, nbr_ref, w_ref, b_ref, o_ref, comb_ref,
                          *, d, d_pad, k_total, tk, ragged_k):
    """Grid = (N tiles, K slabs); K is the (last, 'arbitrary') reduction axis."""
    k = pl.program_id(1)

    # Stream the neighbor slab, upcast to f32 (v5e has no bf16 VALU), sum over K.
    nbr = nbr_ref[...].astype(jnp.float32)            # (tk, tn, d)
    if ragged_k:
        # Last slab extends past K: zero the out-of-range rows (also kills any
        # garbage from the clipped edge block).
        kk = lax.broadcasted_iota(jnp.int32, nbr.shape, 0)
        nbr = jnp.where(kk + k * tk < k_total, nbr, 0.0)
    slab = jnp.sum(nbr, axis=0)                        # (tn, d)  f32
    if d != d_pad:
        # Lane-align so every comb store is an unmasked, 128-aligned vst.
        slab = jnp.pad(slab, ((0, 0), (0, d_pad - d)))

    @pl.when(k == 0)
    def _init():
        # First half of "combined" = target features (pre-padded, lane-dense);
        # second half = first slab's sum written directly (no zero-fill + "+=").
        comb_ref[:, :d_pad] = tgt_ref[...].astype(jnp.float32)
        comb_ref[:, d_pad:] = slab

    @pl.when(k > 0)
    def _accumulate():
        comb_ref[:, d_pad:] += slab

    @pl.when(k == pl.num_programs(1) - 1)
    def _finalize():
        # Single full-width contraction: cat([tgt, agg], -1) @ W + b, then ReLU.
        acc = jnp.dot(comb_ref[...], w_ref[...], preferred_element_type=jnp.float32)
        acc += b_ref[...]                               # broadcast (1, O_pad)
        o_ref[...] = jnp.maximum(acc, 0.0).astype(o_ref.dtype)


def same_type_aggregator(target_feat, neighbor_feats, weight, bias, *,
                         max_tn=256, max_tk=None,
                         nbr_buf_budget_bytes=8 * 1024 * 1024):
    """target_feat (N,D), neighbor_feats (K,N,D), weight (2D,O), bias (O,) -> (N,O).

    Inputs may be float32 (exact match to the PyTorch module) or bfloat16
    (halves the dominant HBM stream; accumulation stays f32).
    """
    n, d = target_feat.shape
    k_n, n2, d2 = neighbor_feats.shape
    two_d, o = weight.shape
    assert two_d == 2 * d and n2 == n and d2 == d and bias.shape == (o,)
    assert target_feat.dtype == neighbor_feats.dtype

    in_dtype = neighbor_feats.dtype
    itemsize = jnp.dtype(in_dtype).itemsize
    sub = 8 if itemsize >= 4 else 16          # (8,128) for f32, (16,128) for bf16

    d_pad = _round_up(d, 128)
    o_pad = _round_up(o, 128)

    # --- node (N) tiling: pick tile COUNT first, then size --------------------
    n_tiles = max(1, pl.cdiv(n, max_tn))
    tn = _round_up(pl.cdiv(n, n_tiles), sub)
    n_pad = n_tiles * tn                      # >= n; only small arrays are padded

    # --- neighbor (K) tiling: whole K in one slab when it fits the budget -----
    per_k_bytes = tn * d * itemsize
    tk_cap = max(1, nbr_buf_budget_bytes // (2 * per_k_bytes))   # double-buffered
    if max_tk is not None:
        tk_cap = min(tk_cap, max_tk)
    tk_cap = min(tk_cap, k_n)
    k_tiles = pl.cdiv(k_n, tk_cap)
    tk = pl.cdiv(k_n, k_tiles)
    ragged_k = (k_tiles * tk != k_n)

    f32 = jnp.float32
    # Only small arrays are padded / copied; the big (K, N, D) stream is passed as-is.
    tgt_p = jnp.zeros((n_pad, d_pad), in_dtype).at[:n, :d].set(target_feat)
    # Weight laid out so rows [0:d) hit the target half and rows [d_pad:d_pad+d)
    # hit the aggregated half; all other rows are zero -> exact.
    w_p = jnp.zeros((2 * d_pad, o_pad), f32)
    w_p = w_p.at[:d, :o].set(weight[:d].astype(f32))
    w_p = w_p.at[d_pad:d_pad + d, :o].set(weight[d:].astype(f32))
    b_p = jnp.zeros((1, o_pad), f32).at[0, :o].set(bias.astype(f32))

    grid = (n_tiles, k_tiles)

    # VMEM budget from the real per-tile footprint (+25% headroom).
    footprint = (
        2 * tk * tn * d * itemsize            # neighbor slab (double-buffered)
        + 2 * tn * d_pad * itemsize           # target tile
        + 2 * 2 * d_pad * o_pad * 4           # resident weight (still double-buffered)
        + 2 * 8 * o_pad * 4                   # bias
        + 2 * tn * o_pad * itemsize           # output tile
        + tn * 2 * d_pad * 4                  # comb scratch
    )
    vmem_limit = int(min(max(footprint * 5 // 4 + (2 << 20), 16 << 20), 110 << 20))

    kernel = functools.partial(
        _same_type_agg_kernel,
        d=d, d_pad=d_pad, k_total=k_n, tk=tk, ragged_k=ragged_k)

    out_p = pl.pallas_call(
        kernel,
        out_shape=jax.ShapeDtypeStruct((n_pad, o_pad), in_dtype),
        grid_spec=pltpu.PrefetchScalarGridSpec(
            num_scalar_prefetch=0,
            grid=grid,
            in_specs=[
                pl.BlockSpec((tn, d_pad), lambda i, k: (i, 0)),         # target (padded)
                pl.BlockSpec((tk, tn, d), lambda i, k: (k, i, 0)),      # neighbors (raw)
                pl.BlockSpec((2 * d_pad, o_pad), lambda i, k: (0, 0)),  # weight (resident)
                pl.BlockSpec((1, o_pad), lambda i, k: (0, 0)),          # bias (resident)
            ],
            out_specs=pl.BlockSpec((tn, o_pad), lambda i, k: (i, 0)),   # constant in k
            scratch_shapes=[pltpu.VMEM((tn, 2 * d_pad), f32)],
        ),
        compiler_params=pltpu.CompilerParams(
            dimension_semantics=("parallel", "arbitrary"),
            vmem_limit_bytes=vmem_limit,
        ),
    )(tgt_p, neighbor_feats, w_p, b_p)

    return out_p[:n, :o]


def reference(target_feat, neighbor_feats, weight, bias):
    agg = jnp.sum(neighbor_feats.astype(jnp.float32), axis=0)
    combined = jnp.concatenate([target_feat.astype(jnp.float32), agg], axis=-1)
    return jnp.maximum(combined @ weight + bias, 0.0)


if __name__ == "__main__":
    key = jax.random.PRNGKey(0)

    def make_inputs(K, N, D, O, key, dtype=jnp.float32):
        k1, k2, k3, k4 = jax.random.split(key, 4)
        target_feat = jax.random.normal(k1, (N, D), dtype=jnp.float32).astype(dtype)
        neighbor_feats = jax.random.normal(k2, (K, N, D), dtype=jnp.float32).astype(dtype)
        # PyTorch nn.Linear default init: U(-1/sqrt(fan_in), 1/sqrt(fan_in)), fan_in=2D.
        bound = 1.0 / jnp.sqrt(jnp.float32(2 * D))
        weight = jax.random.uniform(k3, (2 * D, O), jnp.float32, -bound, bound)
        bias = jax.random.uniform(k4, (O,), jnp.float32, -bound, bound)
        return target_feat, neighbor_feats, weight, bias

    def run_case(K, N, D, O, key, dtype=jnp.float32, atol=1e-5, rtol=1e-5, **kw):
        tgt, nbr, w, b = make_inputs(K, N, D, O, key, dtype)
        out = same_type_aggregator(tgt, nbr, w, b, **kw)
        out = jax.block_until_ready(out)
        ref = reference(tgt, nbr, w, b)
        assert out.shape == (N, O)
        assert jnp.allclose(out.astype(jnp.float32), ref, atol=atol, rtol=rtol), (
            f"mismatch K={K} N={N} D={D} O={O} dtype={dtype}")

    ka, kb, kc, kd = jax.random.split(key, 4)
    # Tiny single-tile path.
    run_case(K=4, N=8, D=16, O=32, key=ka)
    # Multi-tile N (n_tiles=2, tn=152), whole K in one slab, ragged N edge block.
    run_case(K=10, N=300, D=48, O=96, key=kb)
    # Forced small tiles: multi-slab K with ragged remainder + multi-tile N.
    run_case(K=13, N=300, D=48, O=96, key=kc, max_tn=128, max_tk=4)
    # bf16 streaming path (halves HBM bytes); f32 accumulation inside the kernel.
    run_case(K=6, N=64, D=40, O=48, key=kd, dtype=jnp.bfloat16, atol=5e-2, rtol=5e-2)

    print("KERNEL_OK")
</pallas_src>

<mosaic_0001>
module attributes {stable_mosaic.version = 11 : i64} {
  func.func @_same_type_agg_kernel(%arg0: i32, %arg1: i32, %arg2: memref<8x128xf32, #tpu.memory_space<vmem>>, %arg3: memref<4x8x16xf32, #tpu.memory_space<vmem>>, %arg4: memref<256x128xf32, #tpu.memory_space<vmem>>, %arg5: memref<1x128xf32, #tpu.memory_space<vmem>>, %arg6: memref<8x128xf32, #tpu.memory_space<vmem>>, %arg7: memref<8x256xf32, #tpu.memory_space<vmem>>) attributes {dimension_semantics = [#tpu.dimension_semantics<parallel>, #tpu.dimension_semantics<arbitrary>], iteration_bounds = array<i64: 1, 1>, scalar_prefetch = 0 : i64, scratch_operands = 1 : i64, tpu.core_type = #tpu.core_type<tc>, window_params = [{transform_indices = @transform_0, window_bounds = array<i64: 8, 128>}, {transform_indices = @transform_1, window_bounds = array<i64: 4, 8, 16>}, {pipeline_mode = #tpu.pipeline_mode<synchronous>, transform_indices = @transform_2, window_bounds = array<i64: 256, 128>}, {pipeline_mode = #tpu.pipeline_mode<synchronous>, transform_indices = @transform_3, window_bounds = array<i64: 1, 128>}, {transform_indices = @transform_4, window_bounds = array<i64: 8, 128>}]} {
    %c0 = arith.constant 0 : index
    %c0_0 = arith.constant 0 : index
    %c0_1 = arith.constant 0 : index
    %0 = vector.load %arg3[%c0, %c0_0, %c0_1] : memref<4x8x16xf32, #tpu.memory_space<vmem>>, vector<4x8x16xf32>
    %cst = arith.constant dense<0.000000e+00> : vector<8x16xf32>
    %1 = vector.multi_reduction <add>, %0, %cst [0] : vector<4x8x16xf32> to vector<8x16xf32>
    %c0_i32 = arith.constant 0 : i32
    %2 = arith.sitofp %c0_i32 : i32 to f32
    %3 = vector.broadcast %2 : f32 to vector<8x112xf32>
    %4 = tpu.concatenate %1, %3 in 1 : vector<8x16xf32>, vector<8x112xf32> -> vector<8x128xf32>
    %c0_i32_2 = arith.constant 0 : i32
    %5 = arith.cmpi eq, %arg1, %c0_i32_2 : i32
    %6 = arith.extui %5 : i1 to i32
    %c0_i32_3 = arith.constant 0 : i32
    %7 = arith.cmpi ne, %6, %c0_i32_3 : i32
    scf.if %7 {
      %c0_8 = arith.constant 0 : index
      %c0_9 = arith.constant 0 : index
      %14 = vector.load %arg2[%c0_8, %c0_9] : memref<8x128xf32, #tpu.memory_space<vmem>>, vector<8x128xf32>
      %c0_10 = arith.constant 0 : index
      %c0_11 = arith.constant 0 : index
      %15 = vector.load %arg7[%c0_10, %c0_11] : memref<8x256xf32, #tpu.memory_space<vmem>>, vector<8x128xf32>
      tpu.vector_store %arg7[%c0_10, %c0_11], %14 {strides = array<i32>} : memref<8x256xf32, #tpu.memory_space<vmem>>, vector<8x128xf32>,
      %c0_12 = arith.constant 0 : index
      %c128 = arith.constant 128 : index
      %16 = vector.load %arg7[%c0_12, %c128] : memref<8x256xf32, #tpu.memory_space<vmem>>, vector<8x128xf32>
      tpu.vector_store %arg7[%c0_12, %c128], %4 {strides = array<i32>} : memref<8x256xf32, #tpu.memory_space<vmem>>, vector<8x128xf32>,
    } else {
    }
    %c0_i32_4 = arith.constant 0 : i32
    %8 = arith.cmpi sgt, %arg1, %c0_i32_4 : i32
    %9 = arith.extui %8 : i1 to i32
    %c0_i32_5 = arith.constant 0 : i32
    %10 = arith.cmpi ne, %9, %c0_i32_5 : i32
    scf.if %10 {
      %c0_8 = arith.constant 0 : index
      %c128 = arith.constant 128 : index
      %14 = vector.load %arg7[%c0_8, %c128] : memref<8x256xf32, #tpu.memory_space<vmem>>, vector<8x128xf32>
      %15 = arith.addf %14, %4 : vector<8x128xf32>
      %c0_9 = arith.constant 0 : index
      %c128_10 = arith.constant 128 : index
      %16 = vector.load %arg7[%c0_9, %c128_10] : memref<8x256xf32, #tpu.memory_space<vmem>>, vector<8x128xf32>
      tpu.vector_store %arg7[%c0_9, %c128_10], %15 {strides = array<i32>} : memref<8x256xf32, #tpu.memory_space<vmem>>, vector<8x128xf32>,
    } else {
    }
    %c0_i32_6 = arith.constant 0 : i32
    %11 = arith.cmpi eq, %arg1, %c0_i32_6 : i32
    %12 = arith.extui %11 : i1 to i32
    %c0_i32_7 = arith.constant 0 : i32
    %13 = arith.cmpi ne, %12, %c0_i32_7 : i32
    scf.if %13 {
      %c0_8 = arith.constant 0 : index
      %c0_9 = arith.constant 0 : index
      %14 = vector.load %arg7[%c0_8, %c0_9] : memref<8x256xf32, #tpu.memory_space<vmem>>, vector<8x256xf32>
      %c0_10 = arith.constant 0 : index
      %c0_11 = arith.constant 0 : index
      %15 = vector.load %arg4[%c0_10, %c0_11] : memref<256x128xf32, #tpu.memory_space<vmem>>, vector<256x128xf32>
      %cst_12 = arith.constant dense<0.000000e+00> : vector<8x128xf32>
      %16 = tpu.matmul %14, %15, %cst_12 {dimension_numbers = #tpu.dot_dimension_numbers<[1], [0], [0], [1], [0, 0, 1, 1], [], []>} : vector<8x256xf32>, vector<256x128xf32>, vector<8x128xf32> -> vector<8x128xf32>
      %c0_13 = arith.constant 0 : index
      %c0_14 = arith.constant 0 : index
      %17 = vector.load %arg5[%c0_13, %c0_14] : memref<1x128xf32, #tpu.memory_space<vmem>>, vector<1x128xf32>
      %18 = vector.broadcast %17 : vector<1x128xf32> to vector<8x128xf32>
      %19 = arith.addf %16, %18 : vector<8x128xf32>
      %cst_15 = arith.constant 0.000000e+00 : f32
      %20 = vector.broadcast %cst_15 : f32 to vector<8x128xf32>
      %21 = arith.maximumf %19, %20 : vector<8x128xf32>
      %c0_16 = arith.constant 0 : index
      %c0_17 = arith.constant 0 : index
      %22 = vector.load %arg6[%c0_16, %c0_17] : memref<8x128xf32, #tpu.memory_space<vmem>>, vector<8x128xf32>
      tpu.vector_store %arg6[%c0_16, %c0_17], %21 {strides = array<i32>} : memref<8x128xf32, #tpu.memory_space<vmem>>, vector<8x128xf32>,
    } else {
    }
    return
  }
  func.func @transform_0(%arg0: i32, %arg1: i32) -> (i32, i32) {
    %c0_i32 = arith.constant 0 : i32
    %c0_i32_0 = arith.constant 0 : i32
    return %arg0, %c0_i32 : i32, i32
  }
  func.func @transform_1(%arg0: i32, %arg1: i32) -> (i32, i32, i32) {
    %c0_i32 = arith.constant 0 : i32
    %c0_i32_0 = arith.constant 0 : i32
    return %arg1, %arg0, %c0_i32 : i32, i32, i32
  }
  func.func @transform_2(%arg0: i32, %arg1: i32) -> (i32, i32) {
    %c0_i32 = arith.constant 0 : i32
    %c0_i32_0 = arith.constant 0 : i32
    %c0_i32_1 = arith.constant 0 : i32
    return %c0_i32, %c0_i32_0 : i32, i32
  }
  func.func @transform_3(%arg0: i32, %arg1: i32) -> (i32, i32) {
    %c0_i32 = arith.constant 0 : i32
    %c0_i32_0 = arith.constant 0 : i32
    %c0_i32_1 = arith.constant 0 : i32
    return %c0_i32, %c0_i32_0 : i32, i32
  }
  func.func @transform_4(%arg0: i32, %arg1: i32) -> (i32, i32) {
    %c0_i32 = arith.constant 0 : i32
    %c0_i32_0 = arith.constant 0 : i32
    return %arg0, %c0_i32 : i32, i32
  }
}

</mosaic_0001>

<llo_original>
// kernel: tpu_custom_call.1
$region0: #{tpu_custom_call.1}
  #allocation0 [shape = 'u32[]', space=smem, size = 0x4, offset = 0x4, fixed_abs, tag = 'smem constant byte address 0x4 - core index']
  #allocation1 [shape = 'u32[144,128]{1,0:T(1,128)}', space=vmem, size = 0x12000, scoped, tag = 'internal scratch']
  #allocation2 [shape = 'f32[8,256]{1,0:T(8,128)}', space=vmem, size = 0x2000, scoped, tag = 'scratch operand']
  %s0 = inlined_call_operand.hbm [shape: f32[8,128], index: 0, kind: input, shape index: {}]
  %s1 = inlined_call_operand.hbm [shape: f32[4,8,16], index: 1, kind: input, shape index: {}]
  %s2 = inlined_call_operand.hbm [shape: f32[256,128], index: 2, kind: input, shape index: {}]
  %s3 = inlined_call_operand.vmem [shape: f32[1,128], index: 3, kind: input, shape index: {}]
  %s4 = inlined_call_operand.hbm [shape: f32[8,128], index: 4, kind: output, shape index: {}]
  %s5 = sld [smem:[#allocation0]]
  $region50: #{tpu_custom_call.1} parent=0
    _
  %s7 = ssub.s32 1, %s5
  %s8 = scalar_select 0, %s7, %s5
  $region1: #{tpu_custom_call.1} parent=0
    #allocation3 [shape = 'u8[4096]{0}', space=vmem, size = 0x1000, scoped, tag = 'input window, operand 0, single buffered']
    #allocation4 [shape = 's32[1]{0}', space=sflag, size = 0x4, scoped, tag = 'scoped memory for tpu_custom_call.1']
    #allocation5 [shape = 's32[1]{0}', space=sflag, size = 0x4, scoped, tag = 'scoped memory for tpu_custom_call.1']
    #allocation6 [shape = 'u8[16384]{0}', space=vmem, size = 0x4000, scoped, tag = 'input window, operand 1, single buffered']
    #allocation7 [shape = 's32[1]{0}', space=sflag, size = 0x4, scoped, tag = 'scoped memory for tpu_custom_call.1']
    #allocation8 [shape = 'u8[131072]{0}', space=vmem, size = 0x20000, scoped, tag = 'input window, operand 2, single buffered']
    #allocation9 [shape = 'u8[4096]{0}', space=vmem, size = 0x1000, scoped, tag = 'output window, operand 0, single buffered']
    %9 = vsyncpa [#allocation4], 0
    %10 = vsyncpa [#allocation7], 0
    %11 = vsyncpa [#allocation5], 0
    // Predicated region
    $region2: #{tpu_custom_call.1} parent=1 // pred_check
      _
    $region3: #{tpu_custom_call.1} parent=1 // pred_check_branch
      %13 = sbr.rel (0) target = $region5
    $region4: #{tpu_custom_call.1} parent=1 // pred_region
      %s15 = ssub.s32 128, 128
      %16 = vsyncadd [#allocation4], %s15
      %s18 = sshll.u32 [#allocation3], 4
      %s19 = int_to_ptr.vmem [resolvable:$true] %s18
      %21 = dma.hbm_to_vmem [thread:$0]  %s0, 128, %s19, [#allocation4]
    $region5: #{tpu_custom_call.1} parent=1 // pred_fallthru
      _
    // Predicated region
    $region6: #{tpu_custom_call.1} parent=1 // pred_check
      _
    $region7: #{tpu_custom_call.1} parent=1 // pred_check_branch
      %23 = sbr.rel (0) target = $region9
    $region8: #{tpu_custom_call.1} parent=1 // pred_region
      %s25 = ssub.s32 512, 512
      %26 = vsyncadd [#allocation7], %s25
      %s27 = sshll.u32 [#allocation6], 4
      %s28 = int_to_ptr.vmem [resolvable:$true] %s27
      %33 = dma.hbm_to_vmem [thread:$0]  %s1, 512, %s28, [#allocation7], 128, 128, 8
    $region9: #{tpu_custom_call.1} parent=1 // pred_fallthru
      _
    // Predicated region
    $region10: #{tpu_custom_call.1} parent=1 // pred_check
      _
    $region11: #{tpu_custom_call.1} parent=1 // pred_check_branch
      %35 = sbr.rel (0) target = $region13
    $region12: #{tpu_custom_call.1} parent=1 // pred_region
      %s37 = ssub.s32 4096, 4096
      %38 = vsyncadd [#allocation7], %s37
      %s39 = sshll.u32 [#allocation8], 4
      %s40 = int_to_ptr.vmem [resolvable:$true] %s39
      %45 = dma.hbm_to_vmem [thread:$0]  %s2, 4096, %s40, [#allocation7], 128, 128, 8
    $region13: #{tpu_custom_call.1} parent=1 // pred_fallthru
      _
    // Predicated region
    $region14: #{tpu_custom_call.1} parent=1 // pred_check
      _
    $region15: #{tpu_custom_call.1} parent=1 // pred_check_branch
      %47 = sbr.rel (0) target = $region17
    $region16: #{tpu_custom_call.1} parent=1 // pred_region
      _
    $region17: #{tpu_custom_call.1} parent=1 // pred_fallthru
      _
    // Predicated region
    $region18: #{tpu_custom_call.1} parent=1 // pred_check
      _
    $region19: #{tpu_custom_call.1} parent=1 // pred_check_branch
      %49 = sbr.rel (0) target = $region21
    $region20: #{tpu_custom_call.1} parent=1 // pred_region
      %50 = dma.done [#allocation4], 128
    $region21: #{tpu_custom_call.1} parent=1 // pred_fallthru
      _
    // Predicated region
    $region22: #{tpu_custom_call.1} parent=1 // pred_check
      _
    $region23: #{tpu_custom_call.1} parent=1 // pred_check_branch
      %52 = sbr.rel (0) target = $region25
    $region24: #{tpu_custom_call.1} parent=1 // pred_region
      %53 = dma.done [#allocation7], 512
    $region25: #{tpu_custom_call.1} parent=1 // pred_fallthru
      _
    // Predicated region
    $region26: #{tpu_custom_call.1} parent=1 // pred_check
      _
    $region27: #{tpu_custom_call.1} parent=1 // pred_check_branch
      %55 = sbr.rel (0) target = $region29
    $region28: #{tpu_custom_call.1} parent=1 // pred_region
      %56 = dma.done [#allocation7], 4096
    $region29: #{tpu_custom_call.1} parent=1 // pred_fallthru
      _
    %v57 = vld [vmem:[#allocation6] sm:$0xff]
    %v58 = vld [vmem:[#allocation6 + $0x8] sm:$0xff]
    %v59 = vld [vmem:[#allocation6 + $0x10] sm:$0xff]
    %v60 = vld [vmem:[#allocation6 + $0x18] sm:$0xff]
    %vm61 = vcmask 130048
    %v62 = vsel %vm61, %v57, 0.0
    %v63 = vsel %vm61, %v58, 0.0
    %v64 = vadd.f32 %v62, %v63
    %v65 = vsel %vm61, %v59, 0.0
    %v66 = vadd.f32 %v64, %v65
    %v67 = vsel %vm61, %v60, 0.0
    %v68 = vadd.f32 %v66, %v67
    %v69 = vsel %vm61, %v68, 0.0
    %p70 = scmp.eq.s32.totalorder 0, 0
    // Predicated region
    $region30: #{tpu_custom_call.1} parent=1 // pred_check
      %p71 = pneg %p70
    $region31: #{tpu_custom_call.1} parent=1 // pred_check_branch
      %73 = sbr.rel (%p71) target = $region33
    $region32: #{tpu_custom_call.1} parent=1 // pred_region
      %v74 = vld [vmem:[#allocation3] sm:$0xff]
      %75 = vst [vmem:[#allocation2] sm:$0xff] %v74
      %76 = vst [vmem:[#allocation2 + $0x8] sm:$0xff] %v69
    $region33: #{tpu_custom_call.1} parent=1 // pred_fallthru
      _
    %p77 = scmp.gt.s32.totalorder 0, 0
    // Predicated region
    $region34: #{tpu_custom_call.1} parent=1 // pred_check
      %p78 = pneg %p77
    $region35: #{tpu_custom_call.1} parent=1 // pred_check_branch
      %80 = sbr.rel (%p78) target = $region37
    $region36: #{tpu_custom_call.1} parent=1 // pred_region
      %v81 = vld [vmem:[#allocation2 + $0x8] sm:$0xff]
      %v82 = vadd.f32 %v81, %v69
      %83 = vst [vmem:[#allocation2 + $0x8] sm:$0xff] %v82
    $region37: #{tpu_custom_call.1} parent=1 // pred_fallthru
      _
    // Predicated region
    $region38: #{tpu_custom_call.1} parent=1 // pred_check
      %p84 = pneg %p70
    $region39: #{tpu_custom_call.1} parent=1 // pred_check_branch
      %86 = sbr.rel (%p84) target = $region41
    $region40: #{tpu_custom_call.1} parent=1 // pred_region
      %v87 = vld [vmem:[#allocation2] sm:$0xff]
      %v88 = vld [vmem:[#allocation2 + $0x8] sm:$0xff]
      %v89 = vld [vmem:[#allocation8] sm:$0xff]
      %v90 = vld [vmem:[#allocation8 + $0x8] sm:$0xff]
      %v91 = vld [vmem:[#allocation8 + $0x10] sm:$0xff]
      %v92 = vld [vmem:[#allocation8 + $0x18] sm:$0xff]
      %v93 = vld [vmem:[#allocation8 + $0x20] sm:$0xff]
      %v94 = vld [vmem:[#allocation8 + $0x28] sm:$0xff]
      %v95 = vld [vmem:[#allocation8 + $0x30] sm:$0xff]
      %v96 = vld [vmem:[#allocation8 + $0x38] sm:$0xff]
      %v97 = vld [vmem:[#allocation8 + $0x40] sm:$0xff]
      %v98 = vld [vmem:[#allocation8 + $0x48] sm:$0xff]
      %v99 = vld [vmem:[#allocation8 + $0x50] sm:$0xff]
      %v100 = vld [vmem:[#allocation8 + $0x58] sm:$0xff]
      %v101 = vld [vmem:[#allocation8 + $0x60] sm:$0xff]
      %v102 = vld [vmem:[#allocation8 + $0x68] sm:$0xff]
      %v103 = vld [vmem:[#allocation8 + $0x70] sm:$0xff]
      %v104 = vld [vmem:[#allocation8 + $0x78] sm:$0xff]
      %v105 = vld [vmem:[#allocation8 + $0x80] sm:$0xff]
      %v106 = vld [vmem:[#allocation8 + $0x88] sm:$0xff]
      %v107 = vld [vmem:[#allocation8 + $0x90] sm:$0xff]
      %v108 = vld [vmem:[#allocation8 + $0x98] sm:$0xff]
      %v109 = vld [vmem:[#allocation8 + $0xa0] sm:$0xff]
      %v110 = vld [vmem:[#allocation8 + $0xa8] sm:$0xff]
      %v111 = vld [vmem:[#allocation8 + $0xb0] sm:$0xff]
      %v112 = vld [vmem:[#allocation8 + $0xb8] sm:$0xff]
      %v113 = vld [vmem:[#allocation8 + $0xc0] sm:$0xff]
      %v114 = vld [vmem:[#allocation8 + $0xc8] sm:$0xff]
      %v115 = vld [vmem:[#allocation8 + $0xd0] sm:$0xff]
      %v116 = vld [vmem:[#allocation8 + $0xd8] sm:$0xff]
      %v117 = vld [vmem:[#allocation8 + $0xe0] sm:$0xff]
      %v118 = vld [vmem:[#allocation8 + $0xe8] sm:$0xff]
      %v119 = vld [vmem:[#allocation8 + $0xf0] sm:$0xff]
      %v120 = vld [vmem:[#allocation8 + $0xf8] sm:$0xff]
      %v121 = vld [vmem:[%s3] sm:$0x1]
      %v123 = vlaneseq
      %v124 = vshrl.u32 %v123, 7
      %v125 = vsub.s32 0, %v124
      %v126 = vrot.slane %v121, %v125
      %128 = vmatprep.subr.mxu0 0.0
      %129 = vmatpush1.msra.mxu0 %v104
      %130 = vmatprep.subr.mxu0 0.0
      %131 = vmatpush1.msra.mxu0 %v103
      %132 = vmatprep.subr.mxu0 0.0
      %133 = vmatpush1.msra.mxu0 %v102
      %134 = vmatprep.subr.mxu0 0.0
      %135 = vmatpush1.msra.mxu0 %v101
      %136 = vmatprep.subr.mxu0 0.0
      %137 = vmatpush1.msra.mxu0 %v100
      %138 = vmatprep.subr.mxu0 0.0
      %139 = vmatpush1.msra.mxu0 %v99
      %140 = vmatprep.subr.mxu0 0.0
      %141 = vmatpush1.msra.mxu0 %v98
      %142 = vmatprep.subr.mxu0 0.0
      %143 = vmatpush1.msra.mxu0 %v97
      %144 = vmatprep.subr.mxu0 0.0
      %145 = vmatpush1.msra.mxu0 %v96
      %146 = vmatprep.subr.mxu0 0.0
      %147 = vmatpush1.msra.mxu0 %v95
      %148 = vmatprep.subr.mxu0 0.0
      %149 = vmatpush1.msra.mxu0 %v94
      %150 = vmatprep.subr.mxu0 0.0
      %151 = vmatpush1.msra.mxu0 %v93
      %152 = vmatprep.subr.mxu0 0.0
      %153 = vmatpush1.msra.mxu0 %v92
      %154 = vmatprep.subr.mxu0 0.0
      %155 = vmatpush1.msra.mxu0 %v91
      %156 = vmatprep.subr.mxu0 0.0
      %157 = vmatpush1.msra.mxu0 %v90
      %158 = vmatprep.subr.mxu0 0.0
      %159 = vmatpush1.msra.mxu0 %v89
      %160 = vmatprep.subr.mxu0 0.0
      %161 = vmatpush2.msra.mxu0 %v120
      %162 = vmatprep.subr.mxu0 0.0
      %163 = vmatpush2.msra.mxu0 %v119
      %164 = vmatprep.subr.mxu0 0.0
      %165 = vmatpush2.msra.mxu0 %v118
      %166 = vmatprep.subr.mxu0 0.0
      %167 = vmatpush2.msra.mxu0 %v117
      %168 = vmatprep.subr.mxu0 0.0
      %169 = vmatpush2.msra.mxu0 %v116
      %170 = vmatprep.subr.mxu0 0.0
      %171 = vmatpush2.msra.mxu0 %v115
      %172 = vmatprep.subr.mxu0 0.0
      %173 = vmatpush2.msra.mxu0 %v114
      %174 = vmatprep.subr.mxu0 0.0
      %175 = vmatpush2.msra.mxu0 %v113
      %176 = vmatprep.subr.mxu0 0.0
      %177 = vmatpush2.msra.mxu0 %v112
      %178 = vmatprep.subr.mxu0 0.0
      %179 = vmatpush2.msra.mxu0 %v111
      %180 = vmatprep.subr.mxu0 0.0
      %181 = vmatpush2.msra.mxu0 %v110
      %182 = vmatprep.subr.mxu0 0.0
      %183 = vmatpush2.msra.mxu0 %v109
      %184 = vmatprep.subr.mxu0 0.0
      %185 = vmatpush2.msra.mxu0 %v108
      %186 = vmatprep.subr.mxu0 0.0
      %187 = vmatpush2.msra.mxu0 %v107
      %188 = vmatprep.subr.mxu0 0.0
      %189 = vmatpush2.msra.mxu0 %v106
      %190 = vmatprep.subr.mxu0 0.0
      %191 = vmatpush2.msra.mxu0 %v105
      %192 = vmatprep.mubr.f32.mxu0 %v88
      %193 = vmatmul.mubr.f32.gmra.mxu0 %v87
      %v194 = vpop.f32.mrf.mxu0
      %v195 = vadd.f32 %v126, %v194
      %v196 = vpop.f32.mrf.mxu0
      %197 = vdwg.mxu0
      %v198 = vmax.f32 %v195, 0.0
      %199 = vst [vmem:[#allocation9] sm:$0xff] %v198
    $region41: #{tpu_custom_call.1} parent=1 // pred_fallthru
      _
    // Predicated region
    $region42: #{tpu_custom_call.1} parent=1 // pred_check
      _
    $region43: #{tpu_custom_call.1} parent=1 // pred_check_branch
      %201 = sbr.rel (0) target = $region45
    $region44: #{tpu_custom_call.1} parent=1 // pred_region
      %s203 = ssub.s32 128, 128
      %204 = vsyncadd [#allocation5], %s203
      %s206 = sshll.u32 [#allocation9], 4
      %s207 = int_to_ptr.vmem [resolvable:$true] %s206
      %209 = dma.vmem_to_hbm [thread:$0]  %s207, 128, %s4, [#allocation5]
    $region45: #{tpu_custom_call.1} parent=1 // pred_fallthru
      _
    // Predicated region
    $region46: #{tpu_custom_call.1} parent=1 // pred_check
      _
    $region47: #{tpu_custom_call.1} parent=1 // pred_check_branch
      %211 = sbr.rel (0) target = $region49
    $region48: #{tpu_custom_call.1} parent=1 // pred_region
      %212 = dma.done [#allocation5], 128
    $region49: #{tpu_custom_call.1} parent=1 // pred_fallthru
      _
    %213 = vsyncpa [#allocation4], 1
    %214 = vsyncpa [#allocation7], 1
    %215 = vsyncpa [#allocation5], 1

</llo_original>
